<compile_context>
chip_gen: v7x
topology: tpu7x:2x2x1
jax: 0.10.0
libtpu: 0.0.40
codegen_flags: <defaults>
</compile_context>

<pallas_src>
import functools

import jax
import jax.numpy as jnp
from jax.experimental import pallas as pl
from jax.experimental.pallas import tpu as pltpu

HIDDEN = 512
_VMEM_BUDGET = 40 * 1024 * 1024      # working-set budget (fits v7x 64 MiB/TC)
_VMEM_LIMIT = 48 * 1024 * 1024       # scoped VMEM limit passed to Mosaic


def _round_up(x, m):
    return (x + m - 1) // m * m


def _sigmoid(z):
    # exp(-z) -> inf for very negative z gives 0.0 in f32 (no NaN).
    return 1.0 / (1.0 + jnp.exp(-z))


def _resident_kernel(x_ref, w1_ref, b1_ref, w2_ref, b2_ref, o_ref, *,
                     compute_dtype):
    # Whole F in VMEM (w1 resident, fetched once): fused matmul + epilogue.
    h = jnp.dot(x_ref[...].astype(compute_dtype), w1_ref[...],
                preferred_element_type=jnp.float32)          # (tile_b, 512) f32
    h = jnp.maximum(h + b1_ref[...], 0.0)                    # bias + ReLU (f32 VPU)
    z = jnp.sum(h * w2_ref[...], axis=1, keepdims=True)      # fc2: VPU mul + lane reduce
    z = z + b2_ref[0, 0]
    o_ref[...] = _sigmoid(z).astype(o_ref.dtype)


def _streaming_kernel(x_ref, w1_ref, b1_ref, w2_ref, b2_ref, o_ref, acc_ref, *,
                      compute_dtype):
    # Grid: (batch_tiles, f_tiles); F-reduction axis last.
    k = pl.program_id(1)

    @pl.when(k == 0)
    def _init():
        acc_ref[...] = jnp.zeros_like(acc_ref)

    # fc1 partial sum: (tile_b, tile_f) @ (tile_f, 512), f32 accumulation.
    acc_ref[...] += jnp.dot(x_ref[...].astype(compute_dtype), w1_ref[...],
                            preferred_element_type=jnp.float32)

    @pl.when(k == pl.num_programs(1) - 1)
    def _finish():
        h = jnp.maximum(acc_ref[...] + b1_ref[...], 0.0)
        z = jnp.sum(h * w2_ref[...], axis=1, keepdims=True) + b2_ref[0, 0]
        o_ref[...] = _sigmoid(z).astype(o_ref.dtype)


def embedding_classifier(x, w1, b1, w2, b2, *, compute_dtype=jnp.bfloat16,
                         tile_b=None, tile_f=None):
    """Forward pass of EmbeddingClassifier.

    x:  [B, F]        input embeddings (any float dtype; streamed natively)
    w1: [512, F]      fc1.weight (PyTorch layout)
    b1: [512]         fc1.bias
    w2: [1, 512]      fc2.weight (PyTorch layout)
    b2: [1]           fc2.bias
    returns [B, 1] f32 = sigmoid(relu(x @ w1.T + b1) @ w2.T + b2)

    compute_dtype: MXU operand dtype (bf16 default; accumulation stays f32).
    tile_b / tile_f: optional overrides; auto-selected otherwise.
    """
    B, F = x.shape
    assert w1.shape == (HIDDEN, F)
    sx = x.dtype.itemsize
    sw = jnp.dtype(compute_dtype).itemsize

    # ---- batch tile (second-to-last dim: multiple of 8) -------------------
    Bp8 = _round_up(B, 8)
    if tile_b is None:
        if Bp8 >= 512:
            # Keep >= 2 batch tiles so the "parallel" axis can shard across
            # the 2 TensorCores on v7x; cap at 1024 for big batches.
            tile_b = min(1024, _round_up((Bp8 + 1) // 2, 8))
        else:
            tile_b = Bp8
    else:
        tile_b = min(_round_up(tile_b, 8), Bp8)
    Bp = _round_up(B, tile_b)
    nb = Bp // tile_b

    # ---- feature (reduction) tile (lane dim: multiple of 128) -------------
    Fp128 = _round_up(F, 128)

    def vmem_need(tf):
        # double-buffered x & w1 tiles + f32 accumulator + small out/bias.
        return (2 * tile_b * tf * sx + 2 * HIDDEN * tf * sw
                + tile_b * HIDDEN * 4 + 2 * tile_b * 4 + 4 * HIDDEN * 4)

    if tile_f is None:
        if vmem_need(Fp128) <= _VMEM_BUDGET:
            tile_f = Fp128                       # w1 fully VMEM-resident
        else:
            tile_f = min(2048, Fp128)
            while tile_f > 512 and vmem_need(tile_f) > _VMEM_BUDGET:
                tile_f //= 2
    else:
        tile_f = min(_round_up(tile_f, 128), Fp128)
    Fp = _round_up(F, tile_f)
    nk = Fp // tile_f

    # ---- layout plumbing: only the weight is transposed/cast (O(512*F));
    #      x is copied only when its shape is ragged w.r.t. the tiles. -------
    xp = x
    if (Bp, Fp) != (B, F):
        xp = jnp.pad(x, ((0, Bp - B), (0, Fp - F)))
    w1t = w1.T.astype(compute_dtype)             # [F, 512]
    if Fp != F:
        w1t = jnp.pad(w1t, ((0, Fp - F), (0, 0)))
    b1r = b1.reshape(1, HIDDEN).astype(jnp.float32)
    w2r = w2.reshape(1, HIDDEN).astype(jnp.float32)
    b2s = b2.reshape(1, 1).astype(jnp.float32)

    if nk == 1:
        kernel = functools.partial(_resident_kernel, compute_dtype=compute_dtype)
        grid_spec = pltpu.PrefetchScalarGridSpec(
            num_scalar_prefetch=0,
            grid=(nb,),
            in_specs=[
                pl.BlockSpec((tile_b, Fp), lambda i: (i, 0)),      # x tile
                pl.BlockSpec((Fp, HIDDEN), lambda i: (0, 0)),      # w1^T (resident)
                pl.BlockSpec((1, HIDDEN), lambda i: (0, 0)),       # b1
                pl.BlockSpec((1, HIDDEN), lambda i: (0, 0)),       # w2
                pl.BlockSpec(memory_space=pltpu.MemorySpace.SMEM),  # b2 scalar
            ],
            out_specs=pl.BlockSpec((tile_b, 1), lambda i: (i, 0)),
        )
        dim_sem = ("parallel",)
    else:
        kernel = functools.partial(_streaming_kernel, compute_dtype=compute_dtype)
        grid_spec = pltpu.PrefetchScalarGridSpec(
            num_scalar_prefetch=0,
            grid=(nb, nk),
            in_specs=[
                pl.BlockSpec((tile_b, tile_f), lambda i, k: (i, k)),   # x tile
                pl.BlockSpec((tile_f, HIDDEN), lambda i, k: (k, 0)),   # w1^T stream
                pl.BlockSpec((1, HIDDEN), lambda i, k: (0, 0)),        # b1
                pl.BlockSpec((1, HIDDEN), lambda i, k: (0, 0)),        # w2
                pl.BlockSpec(memory_space=pltpu.MemorySpace.SMEM),     # b2 scalar
            ],
            out_specs=pl.BlockSpec((tile_b, 1), lambda i, k: (i, 0)),
            scratch_shapes=[pltpu.VMEM((tile_b, HIDDEN), jnp.float32)],
        )
        dim_sem = ("parallel", "arbitrary")

    out = pl.pallas_call(
        kernel,
        out_shape=jax.ShapeDtypeStruct((Bp, 1), jnp.float32),
        grid_spec=grid_spec,
        compiler_params=pltpu.CompilerParams(
            dimension_semantics=dim_sem,
            vmem_limit_bytes=_VMEM_LIMIT,
        ),
    )(xp, w1t, b1r, w2r, b2s)

    return out[:B]


def _reference(x, w1, b1, w2, b2):
    hp = jax.lax.Precision.HIGHEST
    h = jnp.maximum(jnp.dot(x, w1.T, precision=hp) + b1, 0.0)
    z = jnp.dot(h, w2.T, precision=hp) + b2
    return 1.0 / (1.0 + jnp.exp(-z))


def _make_params(key, F):
    k_w1, k_b1, k_w2, k_b2 = jax.random.split(key, 4)
    w1 = jax.random.uniform(k_w1, (HIDDEN, F), jnp.float32,
                            minval=-1.0, maxval=1.0) / jnp.sqrt(F)
    b1 = jax.random.uniform(k_b1, (HIDDEN,), jnp.float32,
                            minval=-1.0, maxval=1.0) / jnp.sqrt(F)
    w2 = jax.random.uniform(k_w2, (1, HIDDEN), jnp.float32,
                            minval=-1.0, maxval=1.0) / jnp.sqrt(HIDDEN)
    b2 = jax.random.uniform(k_b2, (1,), jnp.float32,
                            minval=-1.0, maxval=1.0) / jnp.sqrt(HIDDEN)
    return w1, b1, w2, b2


if __name__ == "__main__":
    key = jax.random.PRNGKey(0)
    k1, k2, k3, k4 = jax.random.split(key, 4)

    # --- Test 1: small shapes, f32 operands, resident (single-pass) path ---
    B, F = 8, 32
    x = jax.random.normal(k1, (B, F), dtype=jnp.float32)
    w1, b1, w2, b2 = _make_params(k2, F)
    out = jax.block_until_ready(
        embedding_classifier(x, w1, b1, w2, b2, compute_dtype=jnp.float32))
    ref = _reference(x, w1, b1, w2, b2)
    assert out.shape == (B, 1), out.shape
    assert jnp.allclose(out, ref, atol=1e-5, rtol=1e-5), (
        float(jnp.max(jnp.abs(out - ref))))

    # --- Test 2: multi-tile grid (batch tiling + F streaming + padding) ----
    B2, F2 = 300, 640
    x2 = jax.random.normal(k3, (B2, F2), dtype=jnp.float32)
    w1b, b1b, w2b, b2b = _make_params(k4, F2)
    out2 = jax.block_until_ready(
        embedding_classifier(x2, w1b, b1b, w2b, b2b, compute_dtype=jnp.float32,
                             tile_b=128, tile_f=256))
    ref2 = _reference(x2, w1b, b1b, w2b, b2b)
    assert out2.shape == (B2, 1), out2.shape
    assert jnp.allclose(out2, ref2, atol=5e-5, rtol=5e-5), (
        float(jnp.max(jnp.abs(out2 - ref2))))

    # --- Test 3: default bf16 operands, auto tiles (w1 resident) -----------
    out3 = jax.block_until_ready(embedding_classifier(x2, w1b, b1b, w2b, b2b))
    x2_r = x2.astype(jnp.bfloat16).astype(jnp.float32)
    w1_r = w1b.astype(jnp.bfloat16).astype(jnp.float32)
    ref3 = _reference(x2_r, w1_r, b1b, w2b, b2b)
    assert out3.shape == (B2, 1), out3.shape
    assert jnp.allclose(out3, ref3, atol=2e-3, rtol=2e-3), (
        float(jnp.max(jnp.abs(out3 - ref3))))

    print("KERNEL_OK")
</pallas_src>

<mosaic_0001>
module attributes {stable_mosaic.version = 11 : i64} {
  func.func @_resident_kernel(%arg0: i32, %arg1: memref<8x128xf32, #tpu.memory_space<vmem>>, %arg2: memref<128x512xf32, #tpu.memory_space<vmem>>, %arg3: memref<1x512xf32, #tpu.memory_space<vmem>>, %arg4: memref<1x512xf32, #tpu.memory_space<vmem>>, %arg5: memref<1x1xf32, #tpu.memory_space<smem>>, %arg6: memref<8x1xf32, #tpu.memory_space<vmem>>) attributes {dimension_semantics = [#tpu.dimension_semantics<parallel>], iteration_bounds = array<i64: 1>, scalar_prefetch = 0 : i64, scratch_operands = 0 : i64, tpu.core_type = #tpu.core_type<tc>, window_params = [{transform_indices = @transform_0, window_bounds = array<i64: 8, 128>}, {pipeline_mode = #tpu.pipeline_mode<synchronous>, transform_indices = @transform_1, window_bounds = array<i64: 128, 512>}, {pipeline_mode = #tpu.pipeline_mode<synchronous>, transform_indices = @transform_2, window_bounds = array<i64: 1, 512>}, {pipeline_mode = #tpu.pipeline_mode<synchronous>, transform_indices = @transform_3, window_bounds = array<i64: 1, 512>}, {transform_indices = @transform_4, window_bounds = array<i64: 1, 1>}, {transform_indices = @transform_5, window_bounds = array<i64: 8, 1>}]} {
    %c0 = arith.constant 0 : index
    %c0_0 = arith.constant 0 : index
    %0 = vector.load %arg1[%c0, %c0_0] : memref<8x128xf32, #tpu.memory_space<vmem>>, vector<8x128xf32>
    %c0_1 = arith.constant 0 : index
    %c0_2 = arith.constant 0 : index
    %1 = vector.load %arg2[%c0_1, %c0_2] : memref<128x512xf32, #tpu.memory_space<vmem>>, vector<128x512xf32>
    %cst = arith.constant dense<0.000000e+00> : vector<8x512xf32>
    %2 = tpu.matmul %0, %1, %cst {dimension_numbers = #tpu.dot_dimension_numbers<[1], [0], [0], [1], [0, 0, 1, 1], [], []>} : vector<8x128xf32>, vector<128x512xf32>, vector<8x512xf32> -> vector<8x512xf32>
    %c0_3 = arith.constant 0 : index
    %c0_4 = arith.constant 0 : index
    %3 = vector.load %arg3[%c0_3, %c0_4] : memref<1x512xf32, #tpu.memory_space<vmem>>, vector<1x512xf32>
    %4 = vector.broadcast %3 : vector<1x512xf32> to vector<8x512xf32>
    %5 = arith.addf %2, %4 : vector<8x512xf32>
    %cst_5 = arith.constant 0.000000e+00 : f32
    %6 = vector.broadcast %cst_5 : f32 to vector<8x512xf32>
    %7 = arith.maximumf %5, %6 : vector<8x512xf32>
    %c0_6 = arith.constant 0 : index
    %c0_7 = arith.constant 0 : index
    %8 = vector.load %arg4[%c0_6, %c0_7] : memref<1x512xf32, #tpu.memory_space<vmem>>, vector<1x512xf32>
    %9 = vector.broadcast %8 : vector<1x512xf32> to vector<8x512xf32>
    %10 = arith.mulf %7, %9 : vector<8x512xf32>
    %cst_8 = arith.constant dense<0.000000e+00> : vector<8xf32>
    %11 = vector.multi_reduction <add>, %10, %cst_8 [1] : vector<8x512xf32> to vector<8xf32>
    %12 = vector.shape_cast %11 : vector<8xf32> to vector<8x1xf32>
    %c0_9 = arith.constant 0 : index
    %c0_10 = arith.constant 0 : index
    %13 = memref.load %arg5[%c0_9, %c0_10] : memref<1x1xf32, #tpu.memory_space<smem>>
    %14 = vector.broadcast %13 : f32 to vector<8x1xf32>
    %15 = arith.addf %12, %14 : vector<8x1xf32>
    %cst_11 = arith.constant 0.000000e+00 : f32
    %16 = vector.broadcast %cst_11 : f32 to vector<8x1xf32>
    %17 = arith.subf %16, %15 : vector<8x1xf32>
    %18 = math.exp %17 : vector<8x1xf32>
    %cst_12 = arith.constant 1.000000e+00 : f32
    %19 = vector.broadcast %cst_12 : f32 to vector<8x1xf32>
    %20 = arith.addf %19, %18 : vector<8x1xf32>
    %cst_13 = arith.constant 1.000000e+00 : f32
    %21 = vector.broadcast %cst_13 : f32 to vector<8x1xf32>
    %22 = arith.divf %21, %20 : vector<8x1xf32>
    %c0_14 = arith.constant 0 : index
    %c0_15 = arith.constant 0 : index
    %23 = vector.load %arg6[%c0_14, %c0_15] : memref<8x1xf32, #tpu.memory_space<vmem>>, vector<8x1xf32>
    tpu.vector_store %arg6[%c0_14, %c0_15], %22 {strides = array<i32>} : memref<8x1xf32, #tpu.memory_space<vmem>>, vector<8x1xf32>,
    return
  }
  func.func @transform_0(%arg0: i32) -> (i32, i32) {
    %c0_i32 = arith.constant 0 : i32
    %c0_i32_0 = arith.constant 0 : i32
    return %arg0, %c0_i32 : i32, i32
  }
  func.func @transform_1(%arg0: i32) -> (i32, i32) {
    %c0_i32 = arith.constant 0 : i32
    %c0_i32_0 = arith.constant 0 : i32
    %c0_i32_1 = arith.constant 0 : i32
    return %c0_i32, %c0_i32_0 : i32, i32
  }
  func.func @transform_2(%arg0: i32) -> (i32, i32) {
    %c0_i32 = arith.constant 0 : i32
    %c0_i32_0 = arith.constant 0 : i32
    %c0_i32_1 = arith.constant 0 : i32
    return %c0_i32, %c0_i32_0 : i32, i32
  }
  func.func @transform_3(%arg0: i32) -> (i32, i32) {
    %c0_i32 = arith.constant 0 : i32
    %c0_i32_0 = arith.constant 0 : i32
    %c0_i32_1 = arith.constant 0 : i32
    return %c0_i32, %c0_i32_0 : i32, i32
  }
  func.func @transform_4(%arg0: i32) -> (i32, i32) {
    %c0_i32 = arith.constant 0 : i32
    %c0_i32_0 = arith.constant 0 : i32
    %c0_i32_1 = arith.constant 0 : i32
    return %c0_i32, %c0_i32_0 : i32, i32
  }
  func.func @transform_5(%arg0: i32) -> (i32, i32) {
    %c0_i32 = arith.constant 0 : i32
    %c0_i32_0 = arith.constant 0 : i32
    return %arg0, %c0_i32 : i32, i32
  }
}

</mosaic_0001>

<llo_original>
// kernel: tpu_custom_call.1
$region0: #{tpu_custom_call.1}
  #allocation0 [shape = 'u32[]', space=smem, size = 0x4, offset = 0x4, fixed_abs, tag = 'smem constant byte address 0x4 - core index']
  #allocation1 [shape = 'u32[144,128]{1,0:T(1,128)}', space=vmem, size = 0x12000, scoped, tag = 'internal scratch']
  #allocation2 [shape = 'f32[1,1]{1,0:T(1,128)S(6)}', space=smem, size = 0x200, scoped, tag = 'scoped memory for tpu_custom_call.1']
  %s0 = inlined_call_operand.hbm [shape: f32[8,128], index: 0, kind: input, shape index: {}]
  %s1 = inlined_call_operand.hbm [shape: f32[128,512], index: 1, kind: input, shape index: {}]
  %s2 = inlined_call_operand.vmem [shape: f32[1,512], index: 2, kind: input, shape index: {}]
  %s3 = inlined_call_operand.vmem [shape: f32[1,512], index: 3, kind: input, shape index: {}]
  %s4 = inlined_call_operand.<no memory space> [shape: f32[1,1], index: 4, kind: input, shape index: {}]
  %s5 = inlined_call_operand.vmem [shape: f32[8,1], index: 5, kind: output, shape index: {}]
  %s6 = sld [smem:[#allocation0]]
  $region38: #{tpu_custom_call.1} parent=0
    _
  %s8 = ssub.s32 1, %s6
  %s9 = scalar_select 0, %s8, %s6
  %10 = sst [smem:[#allocation2]] %s4
  $region1: #{tpu_custom_call.1} parent=0
    #allocation3 [shape = 'u8[4096]{0}', space=vmem, size = 0x1000, scoped, tag = 'input window, operand 0, single buffered']
    #allocation4 [shape = 's32[1]{0}', space=sflag, size = 0x4, scoped, tag = 'scoped memory for tpu_custom_call.1']
    #allocation5 [shape = 'u8[262144]{0}', space=vmem, size = 0x40000, scoped, tag = 'input window, operand 1, single buffered']
    #allocation6 [shape = 's32[1]{0}', space=sflag, size = 0x4, scoped, tag = 'scoped memory for tpu_custom_call.1']
    %11 = vsyncpa [#allocation4], 0
    %12 = vsyncpa [#allocation6], 0
    // Predicated region
    $region2: #{tpu_custom_call.1} parent=1 // pred_check
      _
    $region3: #{tpu_custom_call.1} parent=1 // pred_check_branch
      %14 = sbr.rel (0) target = $region5
    $region4: #{tpu_custom_call.1} parent=1 // pred_region
      %s16 = ssub.s32 128, 128
      %17 = vsyncadd [#allocation4], %s16
      %s19 = sshll.u32 [#allocation3], 4
      %s20 = int_to_ptr.vmem [resolvable:$true] %s19
      %22 = dma.hbm_to_vmem [thread:$0]  %s0, 128, %s20, [#allocation4]
    $region5: #{tpu_custom_call.1} parent=1 // pred_fallthru
      _
    // Predicated region
    $region6: #{tpu_custom_call.1} parent=1 // pred_check
      _
    $region7: #{tpu_custom_call.1} parent=1 // pred_check_branch
      %24 = sbr.rel (0) target = $region9
    $region8: #{tpu_custom_call.1} parent=1 // pred_region
      %s26 = ssub.s32 8192, 8192
      %27 = vsyncadd [#allocation6], %s26
      %s28 = sshll.u32 [#allocation5], 4
      %s29 = int_to_ptr.vmem [resolvable:$true] %s28
      %34 = dma.hbm_to_vmem [thread:$0]  %s1, 8192, %s29, [#allocation6], 512, 512, 32
    $region9: #{tpu_custom_call.1} parent=1 // pred_fallthru
      _
    // Predicated region
    $region10: #{tpu_custom_call.1} parent=1 // pred_check
      _
    $region11: #{tpu_custom_call.1} parent=1 // pred_check_branch
      %36 = sbr.rel (0) target = $region13
    $region12: #{tpu_custom_call.1} parent=1 // pred_region
      _
    $region13: #{tpu_custom_call.1} parent=1 // pred_fallthru
      _
    // Predicated region
    $region14: #{tpu_custom_call.1} parent=1 // pred_check
      _
    $region15: #{tpu_custom_call.1} parent=1 // pred_check_branch
      %38 = sbr.rel (0) target = $region17
    $region16: #{tpu_custom_call.1} parent=1 // pred_region
      _
    $region17: #{tpu_custom_call.1} parent=1 // pred_fallthru
      _
    // Predicated region
    $region18: #{tpu_custom_call.1} parent=1 // pred_check
      _
    $region19: #{tpu_custom_call.1} parent=1 // pred_check_branch
      %40 = sbr.rel (0) target = $region21
    $region20: #{tpu_custom_call.1} parent=1 // pred_region
      _
    $region21: #{tpu_custom_call.1} parent=1 // pred_fallthru
      _
    // Predicated region
    $region22: #{tpu_custom_call.1} parent=1 // pred_check
      _
    $region23: #{tpu_custom_call.1} parent=1 // pred_check_branch
      %42 = sbr.rel (0) target = $region25
    $region24: #{tpu_custom_call.1} parent=1 // pred_region
      %43 = dma.done [#allocation4], 128
    $region25: #{tpu_custom_call.1} parent=1 // pred_fallthru
      _
    // Predicated region
    $region26: #{tpu_custom_call.1} parent=1 // pred_check
      _
    $region27: #{tpu_custom_call.1} parent=1 // pred_check_branch
      %45 = sbr.rel (0) target = $region29
    $region28: #{tpu_custom_call.1} parent=1 // pred_region
      %46 = dma.done [#allocation6], 8192
    $region29: #{tpu_custom_call.1} parent=1 // pred_fallthru
      _
    %v47 = vld [vmem:[#allocation3] sm:$0xff]
    %v48 = vld [vmem:[#allocation5] sm:$0xff]
    %v49 = vld [vmem:[#allocation5 + $0x8] sm:$0xff]
    %v50 = vld [vmem:[#allocation5 + $0x10] sm:$0xff]
    %v51 = vld [vmem:[#allocation5 + $0x18] sm:$0xff]
    %v52 = vld [vmem:[#allocation5 + $0x20] sm:$0xff]
    %v53 = vld [vmem:[#allocation5 + $0x28] sm:$0xff]
    %v54 = vld [vmem:[#allocation5 + $0x30] sm:$0xff]
    %v55 = vld [vmem:[#allocation5 + $0x38] sm:$0xff]
    %v56 = vld [vmem:[#allocation5 + $0x40] sm:$0xff]
    %v57 = vld [vmem:[#allocation5 + $0x48] sm:$0xff]
    %v58 = vld [vmem:[#allocation5 + $0x50] sm:$0xff]
    %v59 = vld [vmem:[#allocation5 + $0x58] sm:$0xff]
    %v60 = vld [vmem:[#allocation5 + $0x60] sm:$0xff]
    %v61 = vld [vmem:[#allocation5 + $0x68] sm:$0xff]
    %v62 = vld [vmem:[#allocation5 + $0x70] sm:$0xff]
    %v63 = vld [vmem:[#allocation5 + $0x78] sm:$0xff]
    %v64 = vld [vmem:[#allocation5 + $0x80] sm:$0xff]
    %v65 = vld [vmem:[#allocation5 + $0x88] sm:$0xff]
    %v66 = vld [vmem:[#allocation5 + $0x90] sm:$0xff]
    %v67 = vld [vmem:[#allocation5 + $0x98] sm:$0xff]
    %v68 = vld [vmem:[#allocation5 + $0xa0] sm:$0xff]
    %v69 = vld [vmem:[#allocation5 + $0xa8] sm:$0xff]
    %v70 = vld [vmem:[#allocation5 + $0xb0] sm:$0xff]
    %v71 = vld [vmem:[#allocation5 + $0xb8] sm:$0xff]
    %v72 = vld [vmem:[#allocation5 + $0xc0] sm:$0xff]
    %v73 = vld [vmem:[#allocation5 + $0xc8] sm:$0xff]
    %v74 = vld [vmem:[#allocation5 + $0xd0] sm:$0xff]
    %v75 = vld [vmem:[#allocation5 + $0xd8] sm:$0xff]
    %v76 = vld [vmem:[#allocation5 + $0xe0] sm:$0xff]
    %v77 = vld [vmem:[#allocation5 + $0xe8] sm:$0xff]
    %v78 = vld [vmem:[#allocation5 + $0xf0] sm:$0xff]
    %v79 = vld [vmem:[#allocation5 + $0xf8] sm:$0xff]
    %v80 = vld [vmem:[#allocation5 + $0x100] sm:$0xff]
    %v81 = vld [vmem:[#allocation5 + $0x108] sm:$0xff]
    %v82 = vld [vmem:[#allocation5 + $0x110] sm:$0xff]
    %v83 = vld [vmem:[#allocation5 + $0x118] sm:$0xff]
    %v84 = vld [vmem:[#allocation5 + $0x120] sm:$0xff]
    %v85 = vld [vmem:[#allocation5 + $0x128] sm:$0xff]
    %v86 = vld [vmem:[#allocation5 + $0x130] sm:$0xff]
    %v87 = vld [vmem:[#allocation5 + $0x138] sm:$0xff]
    %v88 = vld [vmem:[#allocation5 + $0x140] sm:$0xff]
    %v89 = vld [vmem:[#allocation5 + $0x148] sm:$0xff]
    %v90 = vld [vmem:[#allocation5 + $0x150] sm:$0xff]
    %v91 = vld [vmem:[#allocation5 + $0x158] sm:$0xff]
    %v92 = vld [vmem:[#allocation5 + $0x160] sm:$0xff]
    %v93 = vld [vmem:[#allocation5 + $0x168] sm:$0xff]
    %v94 = vld [vmem:[#allocation5 + $0x170] sm:$0xff]
    %v95 = vld [vmem:[#allocation5 + $0x178] sm:$0xff]
    %v96 = vld [vmem:[#allocation5 + $0x180] sm:$0xff]
    %v97 = vld [vmem:[#allocation5 + $0x188] sm:$0xff]
    %v98 = vld [vmem:[#allocation5 + $0x190] sm:$0xff]
    %v99 = vld [vmem:[#allocation5 + $0x198] sm:$0xff]
    %v100 = vld [vmem:[#allocation5 + $0x1a0] sm:$0xff]
    %v101 = vld [vmem:[#allocation5 + $0x1a8] sm:$0xff]
    %v102 = vld [vmem:[#allocation5 + $0x1b0] sm:$0xff]
    %v103 = vld [vmem:[#allocation5 + $0x1b8] sm:$0xff]
    %v104 = vld [vmem:[#allocation5 + $0x1c0] sm:$0xff]
    %v105 = vld [vmem:[#allocation5 + $0x1c8] sm:$0xff]
    %v106 = vld [vmem:[#allocation5 + $0x1d0] sm:$0xff]
    %v107 = vld [vmem:[#allocation5 + $0x1d8] sm:$0xff]
    %v108 = vld [vmem:[#allocation5 + $0x1e0] sm:$0xff]
    %v109 = vld [vmem:[#allocation5 + $0x1e8] sm:$0xff]
    %v110 = vld [vmem:[#allocation5 + $0x1f0] sm:$0xff]
    %v111 = vld [vmem:[#allocation5 + $0x1f8] sm:$0xff]
    %v112 = vld [vmem:[%s2] sm:$0xf]
    %v114 = vlaneseq
    %v115 = vshrl.u32 %v114, 7
    %v116 = vsub.s32 0, %v115
    %v117 = vrot.slane %v112, %v116
    %v118 = vlaneseq
    %v119 = vshrl.u32 %v118, 7
    %v120 = vsub.s32 1, %v119
    %v121 = vrot.slane %v112, %v120
    %v122 = vlaneseq
    %v123 = vshrl.u32 %v122, 7
    %v124 = vsub.s32 2, %v123
    %v125 = vrot.slane %v112, %v124
    %v126 = vlaneseq
    %v127 = vshrl.u32 %v126, 7
    %v128 = vsub.s32 3, %v127
    %v129 = vrot.slane %v112, %v128
    %134 = vmatprep.subr.mxu0 %v49
    %135 = vmatpush1.msra.mxu0 %v48
    %136 = vmatprep.subr.mxu0 %v53
    %137 = vmatpush1.msra.mxu0 %v52
    %138 = vmatprep.subr.mxu0 %v57
    %139 = vmatpush1.msra.mxu0 %v56
    %140 = vmatprep.subr.mxu0 %v61
    %141 = vmatpush1.msra.mxu0 %v60
    %142 = vmatprep.subr.mxu0 %v65
    %143 = vmatpush1.msra.mxu0 %v64
    %144 = vmatprep.subr.mxu0 %v69
    %145 = vmatpush1.msra.mxu0 %v68
    %146 = vmatprep.subr.mxu0 %v73
    %147 = vmatpush1.msra.mxu0 %v72
    %148 = vmatprep.subr.mxu0 %v77
    %149 = vmatpush1.msra.mxu0 %v76
    %150 = vmatprep.subr.mxu0 %v81
    %151 = vmatpush1.msra.mxu0 %v80
    %152 = vmatprep.subr.mxu0 %v85
    %153 = vmatpush1.msra.mxu0 %v84
    %154 = vmatprep.subr.mxu0 %v89
    %155 = vmatpush1.msra.mxu0 %v88
    %156 = vmatprep.subr.mxu0 %v93
    %157 = vmatpush1.msra.mxu0 %v92
    %158 = vmatprep.subr.mxu0 %v97
    %159 = vmatpush1.msra.mxu0 %v96
    %160 = vmatprep.subr.mxu0 %v101
    %161 = vmatpush1.msra.mxu0 %v100
    %162 = vmatprep.subr.mxu0 %v105
    %163 = vmatpush1.msra.mxu0 %v104
    %164 = vmatprep.subr.mxu0 %v109
    %165 = vmatpush1.msra.mxu0 %v108
    %166 = vmatprep.subr.mxu0 0.0
    %167 = vmatpush1.msra.mxu0 0.0
    %168 = vmatprep.subr.mxu0 0.0
    %169 = vmatpush1.msra.mxu0 0.0
    %170 = vmatprep.subr.mxu0 0.0
    %171 = vmatpush1.msra.mxu0 0.0
    %172 = vmatprep.subr.mxu0 0.0
    %173 = vmatpush1.msra.mxu0 0.0
    %174 = vmatprep.subr.mxu0 0.0
    %175 = vmatpush1.msra.mxu0 0.0
    %176 = vmatprep.subr.mxu0 0.0
    %177 = vmatpush1.msra.mxu0 0.0
    %178 = vmatprep.subr.mxu0 0.0
    %179 = vmatpush1.msra.mxu0 0.0
    %180 = vmatprep.subr.mxu0 0.0
    %181 = vmatpush1.msra.mxu0 0.0
    %182 = vmatprep.subr.mxu0 0.0
    %183 = vmatpush1.msra.mxu0 0.0
    %184 = vmatprep.subr.mxu0 0.0
    %185 = vmatpush1.msra.mxu0 0.0
    %186 = vmatprep.subr.mxu0 0.0
    %187 = vmatpush1.msra.mxu0 0.0
    %188 = vmatprep.subr.mxu0 0.0
    %189 = vmatpush1.msra.mxu0 0.0
    %190 = vmatprep.subr.mxu0 0.0
    %191 = vmatpush1.msra.mxu0 0.0
    %192 = vmatprep.subr.mxu0 0.0
    %193 = vmatpush1.msra.mxu0 0.0
    %194 = vmatprep.subr.mxu0 0.0
    %195 = vmatpush1.msra.mxu0 0.0
    %196 = vmatprep.subr.mxu0 0.0
    %197 = vmatpush1.msra.mxu0 0.0
    %198 = vmatprep.mubr.f32.mxu0 0.0
    %199 = vmatmul.mubr.f32.gmra.mrb[0].mxu0 %v47
    %v200 = vpop.f32.mrb[0].mxu0
    %v201 = vadd.f32 %v117, %v200
    %v202 = vpop.f32.mrb[0].mxu0
    %v203 = vadd.f32 %v121, %v202
    %204 = vdwg.mxu0
    %205 = vmatprep.subr.mxu0 %v51
    %206 = vmatpush1.msra.mxu0 %v50
    %207 = vmatprep.subr.mxu0 %v55
    %208 = vmatpush1.msra.mxu0 %v54
    %209 = vmatprep.subr.mxu0 %v59
    %210 = vmatpush1.msra.mxu0 %v58
    %211 = vmatprep.subr.mxu0 %v63
    %212 = vmatpush1.msra.mxu0 %v62
    %213 = vmatprep.subr.mxu0 %v67
    %214 = vmatpush1.msra.mxu0 %v66
    %215 = vmatprep.subr.mxu0 %v71
    %216 = vmatpush1.msra.mxu0 %v70
    %217 = vmatprep.subr.mxu0 %v75
    %218 = vmatpush1.msra.mxu0 %v74
    %219 = vmatprep.subr.mxu0 %v79
    %220 = vmatpush1.msra.mxu0 %v78
    %221 = vmatprep.subr.mxu0 %v83
    %222 = vmatpush1.msra.mxu0 %v82
    %223 = vmatprep.subr.mxu0 %v87
    %224 = vmatpush1.msra.mxu0 %v86
    %225 = vmatprep.subr.mxu0 %v91
    %226 = vmatpush1.msra.mxu0 %v90
    %227 = vmatprep.subr.mxu0 %v95
    %228 = vmatpush1.msra.mxu0 %v94
    %229 = vmatprep.subr.mxu0 %v99
    %230 = vmatpush1.msra.mxu0 %v98
    %231 = vmatprep.subr.mxu0 %v103
    %232 = vmatpush1.msra.mxu0 %v102
    %233 = vmatprep.subr.mxu0 %v107
    %234 = vmatpush1.msra.mxu0 %v106
    %235 = vmatprep.subr.mxu0 %v111
    %236 = vmatpush1.msra.mxu0 %v110
    %237 = vmatprep.subr.mxu0 0.0
    %238 = vmatpush1.msra.mxu0 0.0
    %239 = vmatprep.subr.mxu0 0.0
    %240 = vmatpush1.msra.mxu0 0.0
    %241 = vmatprep.subr.mxu0 0.0
    %242 = vmatpush1.msra.mxu0 0.0
    %243 = vmatprep.subr.mxu0 0.0
    %244 = vmatpush1.msra.mxu0 0.0
    %245 = vmatprep.subr.mxu0 0.0
    %246 = vmatpush1.msra.mxu0 0.0
    %247 = vmatprep.subr.mxu0 0.0
    %248 = vmatpush1.msra.mxu0 0.0
    %249 = vmatprep.subr.mxu0 0.0
    %250 = vmatpush1.msra.mxu0 0.0
    %251 = vmatprep.subr.mxu0 0.0
    %252 = vmatpush1.msra.mxu0 0.0
    %253 = vmatprep.subr.mxu0 0.0
    %254 = vmatpush1.msra.mxu0 0.0
    %255 = vmatprep.subr.mxu0 0.0
    %256 = vmatpush1.msra.mxu0 0.0
    %257 = vmatprep.subr.mxu0 0.0
    %258 = vmatpush1.msra.mxu0 0.0
    %259 = vmatprep.subr.mxu0 0.0
    %260 = vmatpush1.msra.mxu0 0.0
    %261 = vmatprep.subr.mxu0 0.0
    %262 = vmatpush1.msra.mxu0 0.0
    %263 = vmatprep.subr.mxu0 0.0
    %264 = vmatpush1.msra.mxu0 0.0
    %265 = vmatprep.subr.mxu0 0.0
    %266 = vmatpush1.msra.mxu0 0.0
    %267 = vmatprep.subr.mxu0 0.0
    %268 = vmatpush1.msra.mxu0 0.0
    %269 = vmatprep.mubr.f32.mxu0 0.0
    %270 = vmatmul.mubr.f32.gmra.mrb[0].mxu0 %v47
    %v271 = vpop.f32.mrb[0].mxu0
    %v272 = vadd.f32 %v125, %v271
    %v273 = vpop.f32.mrb[0].mxu0
    %v274 = vadd.f32 %v129, %v273
    %275 = vdwg.mxu0
    %v276 = vmax.f32 %v201, 0.0
    %v277 = vmax.f32 %v203, 0.0
    %v278 = vmax.f32 %v272, 0.0
    %v279 = vmax.f32 %v274, 0.0
    %v280 = vld [vmem:[%s3] sm:$0xf]
    %v282 = vlaneseq
    %v283 = vshrl.u32 %v282, 7
    %v284 = vsub.s32 0, %v283
    %v285 = vrot.slane %v280, %v284
    %v286 = vlaneseq
    %v287 = vshrl.u32 %v286, 7
    %v288 = vsub.s32 1, %v287
    %v289 = vrot.slane %v280, %v288
    %v290 = vlaneseq
    %v291 = vshrl.u32 %v290, 7
    %v292 = vsub.s32 2, %v291
    %v293 = vrot.slane %v280, %v292
    %v294 = vlaneseq
    %v295 = vshrl.u32 %v294, 7
    %v296 = vsub.s32 3, %v295
    %v297 = vrot.slane %v280, %v296
    %v302 = vmul.f32 %v276, %v285
    %v303 = vmul.f32 %v277, %v289
    %v304 = vmul.f32 %v278, %v293
    %v305 = vmul.f32 %v279, %v297
    %v306 = vadd.f32 %v302, %v303
    %v307 = vadd.f32 %v306, %v304
    %v308 = vadd.f32 %v307, %v305
    %309 = vadd.xlane.f32.xlu0 %v308
    %v310 = vpop.xlane.xlu0 %309
    %s311 = sld [smem:[#allocation2]]
    %v312 = vstv %s311
    %v313 = vadd.f32 %v310, %v312
    %v314 = vsub.f32 0.0, %v313
    %v315 = vmul.f32 %v314, 1.442695
    %v316 = vpow.pop %v315
    %v317 = vadd.f32 %v316, 1.0
    %v318 = vrcp.pop %v317
    %v319 = vmul.f32 1.0, %v318
    %vm320 = vcmask 7168
    %321 = vst.msk [vmem:[%s5] sm:$0xff] %vm320, %v319
    // Predicated region
    $region30: #{tpu_custom_call.1} parent=1 // pred_check
      _
    $region31: #{tpu_custom_call.1} parent=1 // pred_check_branch
      %323 = sbr.rel (0) target = $region33
    $region32: #{tpu_custom_call.1} parent=1 // pred_region
      _
    $region33: #{tpu_custom_call.1} parent=1 // pred_fallthru
      _
    // Predicated region
    $region34: #{tpu_custom_call.1} parent=1 // pred_check
      _
    $region35: #{tpu_custom_call.1} parent=1 // pred_check_branch
      %325 = sbr.rel (0) target = $region37
    $region36: #{tpu_custom_call.1} parent=1 // pred_region
      _
    $region37: #{tpu_custom_call.1} parent=1 // pred_fallthru
      _
    %326 = vsyncpa [#allocation4], 1
    %327 = vsyncpa [#allocation6], 1

</llo_original>
